<compile_context>
chip_gen: v6e
topology: v6e:2x2x1
jax: 0.10.0
libtpu: 0.0.40
codegen_flags: <defaults>
</compile_context>

<pallas_src>
import functools

import jax
import jax.numpy as jnp
from jax.experimental import pallas as pl
from jax.experimental.pallas import tpu as pltpu


def _round_up(x, m):
    return ((x + m - 1) // m) * m


def _pick_tile(dim, cap, mult):
    """Tile <= ~cap, multiple of `mult`, sized to minimize padding waste."""
    if dim <= cap:
        return _round_up(dim, mult)
    nblocks = -(-dim // cap)                   # ceil(dim / cap)
    return _round_up(-(-dim // nblocks), mult)  # ceil(dim / nblocks), aligned


# ----------------------------- kernels --------------------------------------

def _linear_single_block_kernel(x_ref, w_ref, b_ref, o_ref):
    # Whole problem in one MXU pass: (B, D) @ (D, C) + bias.
    acc = jnp.dot(x_ref[...], w_ref[...], preferred_element_type=jnp.float32)
    o_ref[...] = (acc + b_ref[...].astype(jnp.float32)).astype(o_ref.dtype)


def _linear_accum_out_kernel(x_ref, w_ref, b_ref, o_ref):
    # f32 output: accumulate straight into the resident output block
    # (no scratch, no final cast pass).
    k = pl.program_id(2)

    @pl.when(k == 0)
    def _():
        o_ref[...] = jnp.broadcast_to(b_ref[...], o_ref.shape)

    o_ref[...] += jnp.dot(x_ref[...], w_ref[...],
                          preferred_element_type=jnp.float32)


def _linear_scratch_kernel(x_ref, w_ref, b_ref, o_ref, acc_ref):
    # Low-precision output: keep an f32 VMEM accumulator, cast at the end.
    k = pl.program_id(2)

    @pl.when(k == 0)
    def _():
        acc_ref[...] = jnp.broadcast_to(b_ref[...], acc_ref.shape)

    acc_ref[...] += jnp.dot(x_ref[...], w_ref[...],
                            preferred_element_type=jnp.float32)

    @pl.when(k == pl.num_programs(2) - 1)
    def _():
        o_ref[...] = acc_ref[...].astype(o_ref.dtype)


# ----------------------------- wrapper ---------------------------------------

@functools.partial(jax.jit, static_argnames=("compute_dtype", "single_block"))
def linear_layer(x, weight, bias=None, *, compute_dtype=None, single_block=None):
    """Pallas equivalent of nn.Linear(input_dimension, num_classes)(x).

    x:      (B, D)
    weight: (C, D)   (PyTorch nn.Linear layout)
    bias:   (C,) or None
    returns (B, C) in x.dtype
    """
    B, D = x.shape
    C, D2 = weight.shape
    assert D == D2, "weight/input dim mismatch"
    out_dtype = x.dtype

    # bf16 MXU operands (f32 accumulation preserves accuracy); pass
    # compute_dtype=jnp.float32 to force full-precision operands.
    if compute_dtype is None:
        compute_dtype = jnp.bfloat16 if x.dtype == jnp.float32 else x.dtype
    compute_dtype = jnp.dtype(compute_dtype)

    x_c = x.astype(compute_dtype)
    w_c = weight.T.astype(compute_dtype)                       # (D, C) canonical RHS
    b2 = (bias if bias is not None
          else jnp.zeros((C,), jnp.float32)).astype(jnp.float32).reshape(1, C)

    cost = pl.CostEstimate(
        flops=2 * B * D * C,
        transcendentals=0,
        bytes_accessed=((B * D + D * C) * compute_dtype.itemsize
                        + C * 4 + B * C * jnp.dtype(out_dtype).itemsize))

    # ---- tiny-problem fast path: one block, no padding, no K loop ----
    if single_block is None:
        footprint = ((B * D + D * C) * compute_dtype.itemsize
                     + B * C * 4 + C * 4)
        single_block = (footprint <= 4 * 1024 * 1024
                        and B <= 1024 and C <= 1024 and D <= 2048)

    if single_block:
        return pl.pallas_call(
            _linear_single_block_kernel,
            out_shape=jax.ShapeDtypeStruct((B, C), out_dtype),
            grid=(1,),
            in_specs=[pl.BlockSpec((B, D), lambda i: (0, 0)),
                      pl.BlockSpec((D, C), lambda i: (0, 0)),
                      pl.BlockSpec((1, C), lambda i: (0, 0))],
            out_specs=pl.BlockSpec((B, C), lambda i: (0, 0)),
            cost_estimate=cost,
        )(x_c, w_c, b2)

    # ---- tiled path ----
    # Sublane multiple for the input dtype (8 f32 / 16 bf16 / 32 int8-fp8).
    sub = {4: 8, 2: 16, 1: 32}[compute_dtype.itemsize]
    tm = _pick_tile(B, 512, sub)
    tn = _pick_tile(C, 1024, 128)
    tk = _pick_tile(D, 1024, 128)

    Bp, Cp, Dp = _round_up(B, tm), _round_up(C, tn), _round_up(D, tk)
    xp = x_c if (Bp == B and Dp == D) else jnp.pad(x_c, ((0, Bp - B), (0, Dp - D)))
    wp = w_c if (Dp == D and Cp == C) else jnp.pad(w_c, ((0, Dp - D), (0, Cp - C)))
    bp = b2 if Cp == C else jnp.pad(b2, ((0, 0), (0, Cp - C)))

    grid = (Bp // tm, Cp // tn, Dp // tk)        # K (reduction) axis last

    x_spec = pl.BlockSpec((tm, tk), lambda i, j, k: (i, k))
    w_spec = pl.BlockSpec((tk, tn), lambda i, j, k: (k, j))
    b_spec = pl.BlockSpec((1, tn), lambda i, j, k: (0, j))
    o_spec = pl.BlockSpec((tm, tn), lambda i, j, k: (i, j))

    compiler_params = pltpu.CompilerParams(
        dimension_semantics=("parallel", "parallel", "arbitrary"),
        vmem_limit_bytes=32 * 1024 * 1024)

    if jnp.dtype(out_dtype) == jnp.float32:
        kernel, scratch = _linear_accum_out_kernel, []
    else:
        kernel, scratch = _linear_scratch_kernel, [pltpu.VMEM((tm, tn), jnp.float32)]

    out = pl.pallas_call(
        kernel,
        out_shape=jax.ShapeDtypeStruct((Bp, Cp), out_dtype),
        grid=grid,
        in_specs=[x_spec, w_spec, b_spec],
        out_specs=o_spec,
        scratch_shapes=scratch,
        compiler_params=compiler_params,
        cost_estimate=cost,
    )(xp, wp, bp)

    return out[:B, :C] if (Bp != B or Cp != C) else out


if __name__ == "__main__":
    # Module config: LinearLayer(input_dimension=32, num_classes=16, bias=True)
    input_dimension = 32
    num_classes = 16
    batch = 8

    key = jax.random.PRNGKey(0)
    kx, kw, kb = jax.random.split(key, 3)

    x = jax.random.normal(kx, (batch, input_dimension), dtype=jnp.float32)
    bound = 1.0 / (input_dimension ** 0.5)
    weight = jax.random.uniform(
        kw, (num_classes, input_dimension), dtype=jnp.float32,
        minval=-bound, maxval=bound)
    bias = jax.random.uniform(
        kb, (num_classes,), dtype=jnp.float32, minval=-bound, maxval=bound)

    out = jax.block_until_ready(linear_layer(x, weight, bias))

    # Reference computed with the same bf16 operands + f32 accumulation.
    def ref_fn(xv, wv, bv=None):
        y = jnp.dot(xv.astype(jnp.bfloat16).astype(jnp.float32),
                    wv.astype(jnp.bfloat16).astype(jnp.float32).T,
                    precision=jax.lax.Precision.HIGHEST)
        return y if bv is None else y + bv[None, :]

    assert out.shape == (batch, num_classes)
    assert jnp.allclose(out, ref_fn(x, weight, bias), atol=1e-4, rtol=1e-4)

    # No-bias path.
    out_nb = jax.block_until_ready(linear_layer(x, weight, None))
    assert jnp.allclose(out_nb, ref_fn(x, weight), atol=1e-4, rtol=1e-4)

    # Exercise the tiled path (padding on every axis + K-grid reduction).
    B2, D2, C2 = 24, 1300, 144
    kx2, kw2, kb2 = jax.random.split(jax.random.PRNGKey(1), 3)
    x2 = jax.random.normal(kx2, (B2, D2), dtype=jnp.float32)
    w2 = jax.random.normal(kw2, (C2, D2), dtype=jnp.float32) * 0.05
    bias2 = jax.random.normal(kb2, (C2,), dtype=jnp.float32)
    out2 = jax.block_until_ready(linear_layer(x2, w2, bias2, single_block=False))
    assert jnp.allclose(out2, ref_fn(x2, w2, bias2), atol=5e-3, rtol=5e-3)

    print("KERNEL_OK")
</pallas_src>

<mosaic_0001>
module attributes {stable_mosaic.version = 11 : i64} {
  func.func @_linear_single_block_kernel(%arg0: i32, %arg1: memref<8x32xbf16, #tpu.memory_space<vmem>>, %arg2: memref<32x16xbf16, #tpu.memory_space<vmem>>, %arg3: memref<1x16xf32, #tpu.memory_space<vmem>>, %arg4: memref<8x16xf32, #tpu.memory_space<vmem>>) attributes {dimension_semantics = [#tpu.dimension_semantics<arbitrary>], iteration_bounds = array<i64: 1>, scalar_prefetch = 0 : i64, scratch_operands = 0 : i64, tpu.core_type = #tpu.core_type<tc>, window_params = [{pipeline_mode = #tpu.pipeline_mode<synchronous>, transform_indices = @transform_0, window_bounds = array<i64: 8, 32>}, {pipeline_mode = #tpu.pipeline_mode<synchronous>, transform_indices = @transform_1, window_bounds = array<i64: 32, 16>}, {pipeline_mode = #tpu.pipeline_mode<synchronous>, transform_indices = @transform_2, window_bounds = array<i64: 1, 16>}, {pipeline_mode = #tpu.pipeline_mode<synchronous>, transform_indices = @transform_3, window_bounds = array<i64: 8, 16>}]} {
    %c0 = arith.constant 0 : index
    %c0_0 = arith.constant 0 : index
    %0 = vector.load %arg1[%c0, %c0_0] : memref<8x32xbf16, #tpu.memory_space<vmem>>, vector<8x32xbf16>
    %c0_1 = arith.constant 0 : index
    %c0_2 = arith.constant 0 : index
    %1 = vector.load %arg2[%c0_1, %c0_2] : memref<32x16xbf16, #tpu.memory_space<vmem>>, vector<32x16xbf16>
    %cst = arith.constant dense<0.000000e+00> : vector<8x16xf32>
    %2 = tpu.matmul %0, %1, %cst {dimension_numbers = #tpu.dot_dimension_numbers<[1], [0], [0], [1], [0, 0, 1, 1], [], []>} : vector<8x32xbf16>, vector<32x16xbf16>, vector<8x16xf32> -> vector<8x16xf32>
    %c0_3 = arith.constant 0 : index
    %c0_4 = arith.constant 0 : index
    %3 = vector.load %arg3[%c0_3, %c0_4] : memref<1x16xf32, #tpu.memory_space<vmem>>, vector<1x16xf32>
    %4 = vector.broadcast %3 : vector<1x16xf32> to vector<8x16xf32>
    %5 = arith.addf %2, %4 : vector<8x16xf32>
    %c0_5 = arith.constant 0 : index
    %c0_6 = arith.constant 0 : index
    %6 = vector.load %arg4[%c0_5, %c0_6] : memref<8x16xf32, #tpu.memory_space<vmem>>, vector<8x16xf32>
    tpu.vector_store %arg4[%c0_5, %c0_6], %5 {strides = array<i32>} : memref<8x16xf32, #tpu.memory_space<vmem>>, vector<8x16xf32>,
    return
  }
  func.func @transform_0(%arg0: i32) -> (i32, i32) {
    %c0_i32 = arith.constant 0 : i32
    %c0_i32_0 = arith.constant 0 : i32
    %c0_i32_1 = arith.constant 0 : i32
    return %c0_i32, %c0_i32_0 : i32, i32
  }
  func.func @transform_1(%arg0: i32) -> (i32, i32) {
    %c0_i32 = arith.constant 0 : i32
    %c0_i32_0 = arith.constant 0 : i32
    %c0_i32_1 = arith.constant 0 : i32
    return %c0_i32, %c0_i32_0 : i32, i32
  }
  func.func @transform_2(%arg0: i32) -> (i32, i32) {
    %c0_i32 = arith.constant 0 : i32
    %c0_i32_0 = arith.constant 0 : i32
    %c0_i32_1 = arith.constant 0 : i32
    return %c0_i32, %c0_i32_0 : i32, i32
  }
  func.func @transform_3(%arg0: i32) -> (i32, i32) {
    %c0_i32 = arith.constant 0 : i32
    %c0_i32_0 = arith.constant 0 : i32
    %c0_i32_1 = arith.constant 0 : i32
    return %c0_i32, %c0_i32_0 : i32, i32
  }
}

</mosaic_0001>

<llo_original>
// kernel: linear_layer.1
$region0: #{linear_layer.1}
  #allocation0 [shape = 'u32[]', space=smem, size = 0x4, offset = 0x4, fixed_abs, tag = 'smem constant byte address 0x4 - core index']
  #allocation1 [shape = 'u32[144,128]{1,0:T(1,128)}', space=vmem, size = 0x12000, scoped, tag = 'internal scratch']
  %s0 = inlined_call_operand.vmem [shape: bf16[8,32], index: 0, kind: input, shape index: {}]
  %s1 = inlined_call_operand.vmem [shape: bf16[32,16], index: 1, kind: input, shape index: {}]
  %s2 = inlined_call_operand.vmem [shape: f32[1,16], index: 2, kind: input, shape index: {}]
  %s3 = inlined_call_operand.hbm [shape: f32[8,16], index: 3, kind: output, shape index: {}]
  %s4 = sld [smem:[#allocation0]]
  $region22: #{linear_layer.1} parent=0
    _
  %s6 = ssub.s32 1, %s4
  %s7 = scalar_select 0, %s6, %s4
  $region1: #{linear_layer.1} parent=0
    #allocation2 [shape = 'u8[4096]{0}', space=vmem, size = 0x1000, scoped, tag = 'output window, operand 0, single buffered']
    #allocation3 [shape = 's32[1]{0}', space=sflag, size = 0x4, scoped, tag = 'scoped memory for linear_layer.1']
    %8 = vsyncpa [#allocation3], 0
    // Predicated region
    $region2: #{linear_layer.1} parent=1 // pred_check
      _
    $region3: #{linear_layer.1} parent=1 // pred_check_branch
      %10 = sbr.rel (0) target = $region5
    $region4: #{linear_layer.1} parent=1 // pred_region
      _
    $region5: #{linear_layer.1} parent=1 // pred_fallthru
      _
    // Predicated region
    $region6: #{linear_layer.1} parent=1 // pred_check
      _
    $region7: #{linear_layer.1} parent=1 // pred_check_branch
      %12 = sbr.rel (0) target = $region9
    $region8: #{linear_layer.1} parent=1 // pred_region
      _
    $region9: #{linear_layer.1} parent=1 // pred_fallthru
      _
    // Predicated region
    $region10: #{linear_layer.1} parent=1 // pred_check
      _
    $region11: #{linear_layer.1} parent=1 // pred_check_branch
      %14 = sbr.rel (0) target = $region13
    $region12: #{linear_layer.1} parent=1 // pred_region
      _
    $region13: #{linear_layer.1} parent=1 // pred_fallthru
      _
    %v16 = vld [vmem:[%s0] sm:$0xf]
    %v17 = vld [vmem:[%s1] sm:$0xf]
    %v18 = vld [vmem:[%s1 + $0x4] sm:$0xf]
    %v19 = vld [vmem:[%s1 + $0x8] sm:$0xf]
    %v20 = vld [vmem:[%s1 + $0xc] sm:$0xf]
    %v21 = vld [vmem:[%s2] sm:$0x1]
    %v23 = vlaneseq
    %v24 = vshrl.u32 %v23, 7
    %v25 = vsub.s32 0, %v24
    %v26 = vrot.slane %v21, %v25
    %v32 = vunpack.c.l.b16 %v17
    %v33 = vunpack.c.l.b16 %v18
    %v34 = vunpack.c.l.b16 %v19
    %v35 = vunpack.c.l.b16 %v20
    %v36 = vpack.c.b16 %v33, %v32
    %v37 = vpack.c.b16 %v35, %v34
    %vm40 = vcmask 261120
    %v42 = vsel %vm40, %v16, 0
    %44 = vmatprep.subr.bf16.mxu0 0
    %45 = vmatpush1.bf16.msra.mxu0 0
    %46 = vmatprep.subr.bf16.mxu0 0
    %47 = vmatpush1.bf16.msra.mxu0 0
    %48 = vmatprep.subr.bf16.mxu0 0
    %49 = vmatpush1.bf16.msra.mxu0 0
    %50 = vmatprep.subr.bf16.mxu0 0
    %51 = vmatpush1.bf16.msra.mxu0 0
    %52 = vmatprep.subr.bf16.mxu0 0
    %53 = vmatpush1.bf16.msra.mxu0 0
    %54 = vmatprep.subr.bf16.mxu0 0
    %55 = vmatpush1.bf16.msra.mxu0 0
    %56 = vmatprep.subr.bf16.mxu0 0
    %57 = vmatpush1.bf16.msra.mxu0 %v37
    %58 = vmatprep.subr.bf16.mxu0 0
    %59 = vmatpush1.bf16.msra.mxu0 %v36
    %60 = vmatprep.subr.bf16.mxu0 0
    %61 = vmatpush2.bf16.msra.mxu0 0
    %62 = vmatprep.subr.bf16.mxu0 0
    %63 = vmatpush2.bf16.msra.mxu0 0
    %64 = vmatprep.subr.bf16.mxu0 0
    %65 = vmatpush2.bf16.msra.mxu0 0
    %66 = vmatprep.subr.bf16.mxu0 0
    %67 = vmatpush2.bf16.msra.mxu0 0
    %68 = vmatprep.subr.bf16.mxu0 0
    %69 = vmatpush2.bf16.msra.mxu0 0
    %70 = vmatprep.subr.bf16.mxu0 0
    %71 = vmatpush2.bf16.msra.mxu0 0
    %72 = vmatprep.subr.bf16.mxu0 0
    %73 = vmatpush2.bf16.msra.mxu0 0
    %74 = vmatprep.subr.bf16.mxu0 0
    %75 = vmatpush2.bf16.msra.mxu0 0
    %76 = vmatprep.mubr.bf16.mxu0 0
    %77 = vmatmul.mubr.bf16.gmra.mxu0 %v42
    %v78 = vpop.f32.mrf.mxu0
    %v79 = vadd.f32 %v26, %v78
    %v80 = vpop.f32.mrf.mxu0
    %v81 = vpop.f32.mrf.mxu0
    %v82 = vpop.f32.mrf.mxu0
    %83 = vdwg.mxu0
    %vm84 = vcmask 130048
    %85 = vst.msk [vmem:[#allocation2] sm:$0xff] %vm84, %v79
    // Predicated region
    $region14: #{linear_layer.1} parent=1 // pred_check
      _
    $region15: #{linear_layer.1} parent=1 // pred_check_branch
      %87 = sbr.rel (0) target = $region17
    $region16: #{linear_layer.1} parent=1 // pred_region
      %s89 = ssub.s32 128, 128
      %90 = vsyncadd [#allocation3], %s89
      %s92 = sshll.u32 [#allocation2], 4
      %s93 = int_to_ptr.vmem [resolvable:$true] %s92
      %95 = dma.vmem_to_hbm [thread:$0]  %s93, 128, %s3, [#allocation3]
    $region17: #{linear_layer.1} parent=1 // pred_fallthru
      _
    // Predicated region
    $region18: #{linear_layer.1} parent=1 // pred_check
      _
    $region19: #{linear_layer.1} parent=1 // pred_check_branch
      %97 = sbr.rel (0) target = $region21
    $region20: #{linear_layer.1} parent=1 // pred_region
      %98 = dma.done [#allocation3], 128
    $region21: #{linear_layer.1} parent=1 // pred_fallthru
      _
    %99 = vsyncpa [#allocation3], 1

</llo_original>
